<compile_context>
chip_gen: v6e
topology: v6e:2x2x1
jax: 0.10.0
libtpu: 0.0.40
codegen_flags: <defaults>
</compile_context>

<pallas_src>
import functools

import jax
import jax.numpy as jnp
from jax.experimental import pallas as pl
from jax.experimental.pallas import tpu as pltpu

BN_EPS = 1e-5  # PyTorch BatchNorm1d default


def _round_up(x, m):
    return ((x + m - 1) // m) * m


# ----------------------------------------------------------------------------
# Fused Pallas kernel
# ----------------------------------------------------------------------------
def _single_kernel(n_cate, n_num, n_hidden, out_dim, *refs):
    # ref layout (in order):
    #   cate_ref (TM, n_cate) int32
    #   [num_ref (TM, n_num) f32]                 if n_num > 0
    #   fused_tbl_i (n_ids_i, H1) bf16            i = 0..n_cate-1   (tbl_i @ W1-block, BN folded)
    #   [fused_num_w (n_num, H1) f32]             if n_num > 0      (num_w_i @ W1-block)
    #   b1 (1, H1) f32                            (first Linear bias + BN + numeric biases folded)
    #   (w_li bf16, b_li f32) * (n_hidden - 1)    (BN folded)
    #   wp, bp f32                                (predict layer)
    #   out_ref
    idx = 0
    cate_ref = refs[idx]; idx += 1
    num_ref = None
    if n_num > 0:
        num_ref = refs[idx]; idx += 1
    tables = refs[idx: idx + n_cate]; idx += n_cate
    num_w_ref = None
    if n_num > 0:
        num_w_ref = refs[idx]; idx += 1
    b1_ref = refs[idx]; idx += 1
    layer_refs = refs[idx: idx + 2 * (n_hidden - 1)]; idx += 2 * (n_hidden - 1)
    wp_ref = refs[idx]; idx += 1
    bp_ref = refs[idx]; idx += 1
    out_ref = refs[idx]

    TM = cate_ref.shape[0]
    H1 = b1_ref.shape[1]

    # ---- first hidden layer: Linear(+BN) already folded into the tables on host ----
    acc = jnp.zeros((TM, H1), jnp.float32)
    for i in range(n_cate):
        tbl = tables[i][...]                                   # (n_ids_i, H1) bf16, VMEM-resident
        n_ids = tbl.shape[0]
        ids = jnp.clip(cate_ref[:, i:i + 1], 0, n_ids - 1)     # clamp like jnp.take (OOB-safe)
        iota = jax.lax.broadcasted_iota(jnp.int32, (TM, n_ids), 1)
        onehot = (ids == iota).astype(jnp.bfloat16)            # 0/1 exact in bf16
        acc = acc + jnp.dot(onehot, tbl, preferred_element_type=jnp.float32)

    if n_num > 0:
        if n_num <= 4:
            xs = num_ref[...]                                  # (TM, n_num) f32
            fw = num_w_ref[...]                                # (n_num, H1) f32
            for i in range(n_num):
                acc = acc + xs[:, i:i + 1] * fw[i:i + 1, :]    # VPU MAC, exact f32
        else:
            acc = acc + jnp.dot(num_ref[...], num_w_ref[...],
                                preferred_element_type=jnp.float32)

    h = jnp.maximum(acc + b1_ref[...], 0.0)
    # Dropout: identity at inference.  TODO(synk): train-mode dropout RNG not implemented.

    # ---- remaining hidden layers (BN folded into w/b) ----
    # TODO(synk): keep h in bf16 between layers on v6e/v7x (bf16 VPU); f32 kept for v5e portability.
    for li in range(n_hidden - 1):
        w_ref = layer_refs[2 * li]
        b_ref = layer_refs[2 * li + 1]
        h = jnp.dot(h.astype(jnp.bfloat16), w_ref[...],
                    preferred_element_type=jnp.float32) + b_ref[...]
        h = jnp.maximum(h, 0.0)

    # ---- predict + sigmoid ----
    if out_dim == 1:
        # (1, H) contracted with (TM, H) on the last dims -> (1, TM): lane-dense logits
        # stored straight into the (1, TM) output block (unmasked stores).
        logits = jax.lax.dot_general(
            wp_ref[...], h, (((1,), (1,)), ((), ())),
            preferred_element_type=jnp.float32) + bp_ref[...]
        out_ref[...] = jax.nn.sigmoid(logits).astype(out_ref.dtype)
    else:
        logits = jnp.dot(h.astype(jnp.bfloat16), wp_ref[...].astype(jnp.bfloat16),
                         preferred_element_type=jnp.float32) + bp_ref[...]
        out_ref[...] = jax.nn.sigmoid(logits).astype(out_ref.dtype)


# ----------------------------------------------------------------------------
# Host wrapper: fold BN + first Linear, pack params, build batch-tiled pallas_call
# ----------------------------------------------------------------------------
def single_forward(params, cate_feat, num_feat, *, tm_cap=512):
    tables = [t.astype(jnp.float32) for t in params['cate_emb_tables']]
    num_lin = params['num_emb_linear']
    n_cate = len(tables)
    n_num = len(num_lin)
    emb_dim = tables[0].shape[1]
    B = cate_feat.shape[0]

    # --- fold BatchNorm1d (eval mode) into every hidden Linear, in f32 on host ---
    folded = []
    for (w, b, g, beta, rm, rv) in params['mlp']:
        scale = g.astype(jnp.float32) * jax.lax.rsqrt(rv.astype(jnp.float32) + BN_EPS)
        folded.append((w.astype(jnp.float32) * scale,
                       (b.astype(jnp.float32) - rm) * scale + beta))
    n_hidden = len(folded)
    W1, b1 = folded[0]                                     # (D0, H1), (1, H1)
    H1 = W1.shape[1]
    assert W1.shape[0] == (n_cate + n_num) * emb_dim, "first Linear in_dim mismatch"

    # --- fold the first (BN-folded) Linear into per-feature tables / numeric weights ---
    fused_tables = []
    col = 0
    for tbl in tables:
        fused_tables.append(jnp.dot(tbl, W1[col:col + emb_dim, :]).astype(jnp.bfloat16))
        col += emb_dim

    resident = list(fused_tables)
    b1_total = b1
    if n_num > 0:
        num_w = jnp.stack([w for (w, _) in num_lin]).astype(jnp.float32)   # (n_num, emb)
        num_b = jnp.stack([b for (_, b) in num_lin]).astype(jnp.float32)   # (n_num, emb)
        W1_num = W1[col:col + n_num * emb_dim, :].reshape(n_num, emb_dim, H1)
        fused_num_w = jnp.einsum('ne,neh->nh', num_w, W1_num)              # (n_num, H1) f32
        b1_total = b1 + jnp.einsum('ne,neh->h', num_b, W1_num)[None, :]
        resident.append(fused_num_w)
    resident.append(b1_total.astype(jnp.float32))

    for (w, b) in folded[1:]:
        resident += [w.astype(jnp.bfloat16), b.astype(jnp.float32)]

    out_dim = params['predict_w'].shape[1]
    if out_dim == 1:
        wp = params['predict_w'].T.astype(jnp.float32)      # (1, H_last) for lane-dense path
        bp = params['predict_b'].reshape(1, 1).astype(jnp.float32)
    else:
        wp = params['predict_w'].astype(jnp.float32)        # (H_last, out_dim)
        bp = params['predict_b'].astype(jnp.float32)        # (1, out_dim)
    resident += [wp, bp]

    # --- batch tiling: small batch -> one tile; larger -> >=2 tiles (v7x megacore),
    #     TM a multiple of 128 when multi-tile so the lane-dense output block is legal. ---
    if B <= 256:
        TM = _round_up(B, 8)
    else:
        TM = min(_round_up(tm_cap, 128), _round_up(-(-B // 2), 128))
    G = pl.cdiv(B, TM)

    kernel = functools.partial(_single_kernel, n_cate, n_num, n_hidden, out_dim)

    inputs = [cate_feat.astype(jnp.int32)]
    in_specs = [pl.BlockSpec((TM, n_cate), lambda i: (i, 0))]
    if n_num > 0:
        inputs.append(num_feat.astype(jnp.float32))
        in_specs.append(pl.BlockSpec((TM, n_num), lambda i: (i, 0)))
    # Resident params: constant index_map keeps them in VMEM for the whole grid.
    # TODO(synk): switch to a scalar-prefetch DMA-gather path once the fused tables
    #             approach v7x's 64 MiB VMEM.
    in_specs += [pl.BlockSpec(p.shape, lambda i: (0, 0)) for p in resident]
    inputs += resident

    if out_dim == 1:
        out_shape = jax.ShapeDtypeStruct((1, G * TM), jnp.float32)   # lane-dense
        out_specs = pl.BlockSpec((1, TM), lambda i: (0, i))
    else:
        out_shape = jax.ShapeDtypeStruct((B, out_dim), jnp.float32)
        out_specs = pl.BlockSpec((TM, out_dim), lambda i: (i, 0))

    # VMEM budget: resident params (single copy each in practice, x2 for safety) + tiles.
    param_bytes = sum(int(p.size) * p.dtype.itemsize for p in resident)
    tile_bytes = TM * ((n_cate + max(n_num, 1)) * 4 + max(out_dim, 128) * 4)
    vmem_bytes = int(min(100 << 20, max(16 << 20, 2 * param_bytes + 16 * tile_bytes + (4 << 20))))

    out = pl.pallas_call(
        kernel,
        out_shape=out_shape,
        grid=(G,),
        in_specs=in_specs,
        out_specs=out_specs,
        compiler_params=pltpu.CompilerParams(
            dimension_semantics=("parallel",),
            vmem_limit_bytes=vmem_bytes),
    )(*inputs)

    if out_dim == 1:
        pred = out[0, :B].reshape(B, 1)
    else:
        pred = out
    return {'pred': pred}


# ----------------------------------------------------------------------------
# Pure-JAX reference (unfolded BN, f32) to validate the folding / bf16 path
# ----------------------------------------------------------------------------
def single_forward_reference(params, cate_feat, num_feat):
    cate_embs = [jnp.take(tbl, cate_feat[:, i], axis=0)
                 for i, tbl in enumerate(params['cate_emb_tables'])]
    num_embs = [num_feat[:, i:i + 1] * w[None, :] + b[None, :]
                for i, (w, b) in enumerate(params['num_emb_linear'])]
    h = jnp.concatenate(cate_embs + num_embs, axis=1).astype(jnp.float32)
    for (w, b, g, beta, rm, rv) in params['mlp']:
        h = h @ w + b
        h = (h - rm) * jax.lax.rsqrt(rv + BN_EPS) * g + beta
        h = jnp.maximum(h, 0.0)
    logits = h @ params['predict_w'] + params['predict_b']
    return jax.nn.sigmoid(logits)


# ----------------------------------------------------------------------------
# Deterministic parameter construction (mirrors Single.__init__ shapes),
# with non-trivial BatchNorm running stats to exercise the folding path.
# ----------------------------------------------------------------------------
def init_params(key, config):
    emb_dim = config['emb_dim']
    cate_fea_num = config['cate_fea_num']
    num_fea_ids = config['num_fea_ids']
    hidden_units = [emb_dim * 2] + config['hidden_units']
    output_dim = config['output_dim']

    keys = iter(jax.random.split(key, 64))
    params = {}

    params['cate_emb_tables'] = [
        0.1 * jax.random.normal(next(keys), (n_ids, emb_dim), jnp.float32)
        for n_ids in cate_fea_num
    ]
    params['num_emb_linear'] = [
        (0.1 * jax.random.normal(next(keys), (emb_dim,), jnp.float32),   # W (in_features=1)
         0.01 * jax.random.normal(next(keys), (emb_dim,), jnp.float32))  # b
        for _ in range(num_fea_ids)
    ]

    mlp = []
    for i in range(len(hidden_units) - 1):
        din, dout = hidden_units[i], hidden_units[i + 1]
        w = 0.1 * jax.random.normal(next(keys), (din, dout), jnp.float32)      # [in, out]
        b = 0.01 * jax.random.normal(next(keys), (1, dout), jnp.float32)
        gamma = 1.0 + 0.1 * jax.random.normal(next(keys), (1, dout), jnp.float32)
        beta = 0.05 * jax.random.normal(next(keys), (1, dout), jnp.float32)
        run_mean = 0.05 * jax.random.normal(next(keys), (1, dout), jnp.float32)
        run_var = 0.5 + jax.random.uniform(next(keys), (1, dout), jnp.float32)  # in [0.5, 1.5]
        mlp.append((w, b, gamma, beta, run_mean, run_var))
    params['mlp'] = mlp

    params['predict_w'] = 0.1 * jax.random.normal(
        next(keys), (hidden_units[-1], output_dim), jnp.float32)
    params['predict_b'] = 0.01 * jax.random.normal(
        next(keys), (1, output_dim), jnp.float32)
    return params


if __name__ == "__main__":
    config = {
        'emb_dim': 16,
        'dropout_rate': 0.1,
        'num_fea_ids': 1,          # one numeric feature
        'device': None,
        'cate_fea_num': [10],      # one categorical feature with 10 ids
        'output_dim': 1,
        'hidden_units': [64, 32],
    }

    key = jax.random.PRNGKey(0)
    k_param, k_cate, k_num = jax.random.split(key, 3)
    params = init_params(k_param, config)

    B = 8
    cate_feat = jax.random.randint(k_cate, (B, len(config['cate_fea_num'])), 0, 10,
                                   dtype=jnp.int32)
    num_feat = jax.random.normal(k_num, (B, config['num_fea_ids']), jnp.float32)

    out = single_forward(params, cate_feat, num_feat)
    pred = jax.block_until_ready(out['pred'])

    ref = single_forward_reference(params, cate_feat, num_feat)

    assert pred.shape == (B, config['output_dim'])
    assert bool(jnp.all(jnp.isfinite(pred)))
    assert bool(jnp.all((pred >= 0.0) & (pred <= 1.0)))
    max_err = float(jnp.max(jnp.abs(pred - ref)))
    assert max_err < 2e-2, f"mismatch vs reference: {max_err}"
    print("KERNEL_OK")
</pallas_src>

<mosaic_0001>
module attributes {stable_mosaic.version = 11 : i64} {
  func.func @_single_kernel(%arg0: i32, %arg1: memref<8x1xi32, #tpu.memory_space<vmem>>, %arg2: memref<8x1xf32, #tpu.memory_space<vmem>>, %arg3: memref<10x64xbf16, #tpu.memory_space<vmem>>, %arg4: memref<1x64xf32, #tpu.memory_space<vmem>>, %arg5: memref<1x64xf32, #tpu.memory_space<vmem>>, %arg6: memref<64x32xbf16, #tpu.memory_space<vmem>>, %arg7: memref<1x32xf32, #tpu.memory_space<vmem>>, %arg8: memref<1x32xf32, #tpu.memory_space<vmem>>, %arg9: memref<1x1xf32, #tpu.memory_space<vmem>>, %arg10: memref<1x8xf32, #tpu.memory_space<vmem>>) attributes {dimension_semantics = [#tpu.dimension_semantics<parallel>], iteration_bounds = array<i64: 1>, scalar_prefetch = 0 : i64, scratch_operands = 0 : i64, tpu.core_type = #tpu.core_type<tc>, window_params = [{transform_indices = @transform_0, window_bounds = array<i64: 8, 1>}, {transform_indices = @transform_1, window_bounds = array<i64: 8, 1>}, {pipeline_mode = #tpu.pipeline_mode<synchronous>, transform_indices = @transform_2, window_bounds = array<i64: 10, 64>}, {pipeline_mode = #tpu.pipeline_mode<synchronous>, transform_indices = @transform_3, window_bounds = array<i64: 1, 64>}, {pipeline_mode = #tpu.pipeline_mode<synchronous>, transform_indices = @transform_4, window_bounds = array<i64: 1, 64>}, {pipeline_mode = #tpu.pipeline_mode<synchronous>, transform_indices = @transform_5, window_bounds = array<i64: 64, 32>}, {pipeline_mode = #tpu.pipeline_mode<synchronous>, transform_indices = @transform_6, window_bounds = array<i64: 1, 32>}, {pipeline_mode = #tpu.pipeline_mode<synchronous>, transform_indices = @transform_7, window_bounds = array<i64: 1, 32>}, {pipeline_mode = #tpu.pipeline_mode<synchronous>, transform_indices = @transform_8, window_bounds = array<i64: 1, 1>}, {transform_indices = @transform_9, window_bounds = array<i64: 1, 8>}]} {
    %cst = arith.constant 0.000000e+00 : f32
    %0 = vector.broadcast %cst : f32 to vector<8x64xf32>
    %c0 = arith.constant 0 : index
    %c0_0 = arith.constant 0 : index
    %1 = vector.load %arg3[%c0, %c0_0] : memref<10x64xbf16, #tpu.memory_space<vmem>>, vector<10x64xbf16>
    %c0_1 = arith.constant 0 : index
    %c0_2 = arith.constant 0 : index
    %2 = vector.load %arg1[%c0_1, %c0_2] : memref<8x1xi32, #tpu.memory_space<vmem>>, vector<8x1xi32>
    %c0_i32 = arith.constant 0 : i32
    %c9_i32 = arith.constant 9 : i32
    %3 = vector.broadcast %c0_i32 : i32 to vector<8x1xi32>
    %4 = arith.maxsi %3, %2 : vector<8x1xi32>
    %5 = vector.broadcast %c9_i32 : i32 to vector<8x1xi32>
    %6 = arith.minsi %5, %4 : vector<8x1xi32>
    %7 = tpu.iota {dimensions = array<i32: 1>} : vector<8x10xi32>
    %8 = vector.broadcast %6 : vector<8x1xi32> to vector<8x10xi32>
    %9 = arith.cmpi eq, %8, %7 : vector<8x10xi32>
    %10 = arith.extui %9 : vector<8x10xi1> to vector<8x10xi32>
    %11 = arith.sitofp %10 : vector<8x10xi32> to vector<8x10xf32>
    %12 = arith.truncf %11 : vector<8x10xf32> to vector<8x10xbf16>
    %cst_3 = arith.constant dense<0.000000e+00> : vector<8x64xf32>
    %13 = tpu.matmul %12, %1, %cst_3 {dimension_numbers = #tpu.dot_dimension_numbers<[1], [0], [0], [1], [0, 0, 1, 1], [], []>} : vector<8x10xbf16>, vector<10x64xbf16>, vector<8x64xf32> -> vector<8x64xf32>
    %14 = arith.addf %0, %13 : vector<8x64xf32>
    %c0_4 = arith.constant 0 : index
    %c0_5 = arith.constant 0 : index
    %15 = vector.load %arg2[%c0_4, %c0_5] : memref<8x1xf32, #tpu.memory_space<vmem>>, vector<8x1xf32>
    %c0_6 = arith.constant 0 : index
    %c0_7 = arith.constant 0 : index
    %16 = vector.load %arg4[%c0_6, %c0_7] : memref<1x64xf32, #tpu.memory_space<vmem>>, vector<1x64xf32>
    %17 = vector.broadcast %15 : vector<8x1xf32> to vector<8x64xf32>
    %18 = vector.broadcast %16 : vector<1x64xf32> to vector<8x64xf32>
    %19 = arith.mulf %17, %18 : vector<8x64xf32>
    %20 = arith.addf %14, %19 : vector<8x64xf32>
    %c0_8 = arith.constant 0 : index
    %c0_9 = arith.constant 0 : index
    %21 = vector.load %arg5[%c0_8, %c0_9] : memref<1x64xf32, #tpu.memory_space<vmem>>, vector<1x64xf32>
    %22 = vector.broadcast %21 : vector<1x64xf32> to vector<8x64xf32>
    %23 = arith.addf %20, %22 : vector<8x64xf32>
    %cst_10 = arith.constant 0.000000e+00 : f32
    %24 = vector.broadcast %cst_10 : f32 to vector<8x64xf32>
    %25 = arith.maximumf %23, %24 : vector<8x64xf32>
    %26 = arith.truncf %25 : vector<8x64xf32> to vector<8x64xbf16>
    %c0_11 = arith.constant 0 : index
    %c0_12 = arith.constant 0 : index
    %27 = vector.load %arg6[%c0_11, %c0_12] : memref<64x32xbf16, #tpu.memory_space<vmem>>, vector<64x32xbf16>
    %cst_13 = arith.constant dense<0.000000e+00> : vector<8x32xf32>
    %28 = tpu.matmul %26, %27, %cst_13 {dimension_numbers = #tpu.dot_dimension_numbers<[1], [0], [0], [1], [0, 0, 1, 1], [], []>} : vector<8x64xbf16>, vector<64x32xbf16>, vector<8x32xf32> -> vector<8x32xf32>
    %c0_14 = arith.constant 0 : index
    %c0_15 = arith.constant 0 : index
    %29 = vector.load %arg7[%c0_14, %c0_15] : memref<1x32xf32, #tpu.memory_space<vmem>>, vector<1x32xf32>
    %30 = vector.broadcast %29 : vector<1x32xf32> to vector<8x32xf32>
    %31 = arith.addf %28, %30 : vector<8x32xf32>
    %cst_16 = arith.constant 0.000000e+00 : f32
    %32 = vector.broadcast %cst_16 : f32 to vector<8x32xf32>
    %33 = arith.maximumf %31, %32 : vector<8x32xf32>
    %c0_17 = arith.constant 0 : index
    %c0_18 = arith.constant 0 : index
    %34 = vector.load %arg8[%c0_17, %c0_18] : memref<1x32xf32, #tpu.memory_space<vmem>>, vector<1x32xf32>
    %cst_19 = arith.constant dense<0.000000e+00> : vector<1x8xf32>
    %35 = tpu.matmul %34, %33, %cst_19 {dimension_numbers = #tpu.dot_dimension_numbers<[1], [1], [0], [0], [0, 0, 1, 0], [], []>} : vector<1x32xf32>, vector<8x32xf32>, vector<1x8xf32> -> vector<1x8xf32>
    %c0_20 = arith.constant 0 : index
    %c0_21 = arith.constant 0 : index
    %36 = vector.load %arg9[%c0_20, %c0_21] : memref<1x1xf32, #tpu.memory_space<vmem>>, vector<1x1xf32>
    %37 = vector.broadcast %36 : vector<1x1xf32> to vector<1x8xf32>
    %38 = arith.addf %35, %37 : vector<1x8xf32>
    %39 = arith.negf %38 : vector<1x8xf32>
    %40 = math.exp %39 : vector<1x8xf32>
    %cst_22 = arith.constant 1.000000e+00 : f32
    %41 = vector.broadcast %cst_22 : f32 to vector<1x8xf32>
    %42 = arith.addf %41, %40 : vector<1x8xf32>
    %43 = arith.divf %41, %42 : vector<1x8xf32>
    %c0_23 = arith.constant 0 : index
    %c0_24 = arith.constant 0 : index
    %44 = vector.load %arg10[%c0_23, %c0_24] : memref<1x8xf32, #tpu.memory_space<vmem>>, vector<1x8xf32>
    tpu.vector_store %arg10[%c0_23, %c0_24], %43 {strides = array<i32>} : memref<1x8xf32, #tpu.memory_space<vmem>>, vector<1x8xf32>,
    return
  }
  func.func @transform_0(%arg0: i32) -> (i32, i32) {
    %c0_i32 = arith.constant 0 : i32
    %c0_i32_0 = arith.constant 0 : i32
    return %arg0, %c0_i32 : i32, i32
  }
  func.func @transform_1(%arg0: i32) -> (i32, i32) {
    %c0_i32 = arith.constant 0 : i32
    %c0_i32_0 = arith.constant 0 : i32
    return %arg0, %c0_i32 : i32, i32
  }
  func.func @transform_2(%arg0: i32) -> (i32, i32) {
    %c0_i32 = arith.constant 0 : i32
    %c0_i32_0 = arith.constant 0 : i32
    %c0_i32_1 = arith.constant 0 : i32
    return %c0_i32, %c0_i32_0 : i32, i32
  }
  func.func @transform_3(%arg0: i32) -> (i32, i32) {
    %c0_i32 = arith.constant 0 : i32
    %c0_i32_0 = arith.constant 0 : i32
    %c0_i32_1 = arith.constant 0 : i32
    return %c0_i32, %c0_i32_0 : i32, i32
  }
  func.func @transform_4(%arg0: i32) -> (i32, i32) {
    %c0_i32 = arith.constant 0 : i32
    %c0_i32_0 = arith.constant 0 : i32
    %c0_i32_1 = arith.constant 0 : i32
    return %c0_i32, %c0_i32_0 : i32, i32
  }
  func.func @transform_5(%arg0: i32) -> (i32, i32) {
    %c0_i32 = arith.constant 0 : i32
    %c0_i32_0 = arith.constant 0 : i32
    %c0_i32_1 = arith.constant 0 : i32
    return %c0_i32, %c0_i32_0 : i32, i32
  }
  func.func @transform_6(%arg0: i32) -> (i32, i32) {
    %c0_i32 = arith.constant 0 : i32
    %c0_i32_0 = arith.constant 0 : i32
    %c0_i32_1 = arith.constant 0 : i32
    return %c0_i32, %c0_i32_0 : i32, i32
  }
  func.func @transform_7(%arg0: i32) -> (i32, i32) {
    %c0_i32 = arith.constant 0 : i32
    %c0_i32_0 = arith.constant 0 : i32
    %c0_i32_1 = arith.constant 0 : i32
    return %c0_i32, %c0_i32_0 : i32, i32
  }
  func.func @transform_8(%arg0: i32) -> (i32, i32) {
    %c0_i32 = arith.constant 0 : i32
    %c0_i32_0 = arith.constant 0 : i32
    %c0_i32_1 = arith.constant 0 : i32
    return %c0_i32, %c0_i32_0 : i32, i32
  }
  func.func @transform_9(%arg0: i32) -> (i32, i32) {
    %c0_i32 = arith.constant 0 : i32
    %c0_i32_0 = arith.constant 0 : i32
    return %c0_i32, %arg0 : i32, i32
  }
}

</mosaic_0001>

<llo_original>
// kernel: tpu_custom_call.1
$region0: #{tpu_custom_call.1}
  #allocation0 [shape = 'u32[]', space=smem, size = 0x4, offset = 0x4, fixed_abs, tag = 'smem constant byte address 0x4 - core index']
  #allocation1 [shape = 'u32[144,128]{1,0:T(1,128)}', space=vmem, size = 0x12000, scoped, tag = 'internal scratch']
  #allocation2 [shape = 'f32[1,1]{1,0:T(1,128)S(1)}', space=vmem, size = 0x200, scoped, tag = 'scoped memory for tpu_custom_call.1']
  %s0 = inlined_call_operand.vmem [shape: s32[8,1], index: 0, kind: input, shape index: {}]
  %s1 = inlined_call_operand.vmem [shape: f32[8,1], index: 1, kind: input, shape index: {}]
  %s2 = inlined_call_operand.vmem [shape: bf16[10,64], index: 2, kind: input, shape index: {}]
  %s3 = inlined_call_operand.vmem [shape: f32[1,64], index: 3, kind: input, shape index: {}]
  %s4 = inlined_call_operand.vmem [shape: f32[1,64], index: 4, kind: input, shape index: {}]
  %s5 = inlined_call_operand.vmem [shape: bf16[64,32], index: 5, kind: input, shape index: {}]
  %s6 = inlined_call_operand.vmem [shape: f32[1,32], index: 6, kind: input, shape index: {}]
  %s7 = inlined_call_operand.vmem [shape: f32[1,32], index: 7, kind: input, shape index: {}]
  %s8 = inlined_call_operand.<no memory space> [shape: f32[1,1], index: 8, kind: input, shape index: {}]
  %s9 = inlined_call_operand.hbm [shape: f32[1,8], index: 9, kind: output, shape index: {}]
  %s10 = sld [smem:[#allocation0]]
  $region46: #{tpu_custom_call.1} parent=0
    _
  %s12 = ssub.s32 1, %s10
  %s13 = scalar_select 0, %s12, %s10
  %v14 = vstv %s8
  %15 = vst [vmem:[#allocation2] sm:$0x1] %v14
  $region1: #{tpu_custom_call.1} parent=0
    #allocation3 [shape = 'u8[512]{0}', space=vmem, size = 0x400, scoped, tag = 'output window, operand 0, single buffered']
    #allocation4 [shape = 's32[1]{0}', space=sflag, size = 0x4, scoped, tag = 'scoped memory for tpu_custom_call.1']
    %16 = vsyncpa [#allocation4], 0
    // Predicated region
    $region2: #{tpu_custom_call.1} parent=1 // pred_check
      _
    $region3: #{tpu_custom_call.1} parent=1 // pred_check_branch
      %18 = sbr.rel (0) target = $region5
    $region4: #{tpu_custom_call.1} parent=1 // pred_region
      _
    $region5: #{tpu_custom_call.1} parent=1 // pred_fallthru
      _
    // Predicated region
    $region6: #{tpu_custom_call.1} parent=1 // pred_check
      _
    $region7: #{tpu_custom_call.1} parent=1 // pred_check_branch
      %20 = sbr.rel (0) target = $region9
    $region8: #{tpu_custom_call.1} parent=1 // pred_region
      _
    $region9: #{tpu_custom_call.1} parent=1 // pred_fallthru
      _
    // Predicated region
    $region10: #{tpu_custom_call.1} parent=1 // pred_check
      _
    $region11: #{tpu_custom_call.1} parent=1 // pred_check_branch
      %22 = sbr.rel (0) target = $region13
    $region12: #{tpu_custom_call.1} parent=1 // pred_region
      _
    $region13: #{tpu_custom_call.1} parent=1 // pred_fallthru
      _
    // Predicated region
    $region14: #{tpu_custom_call.1} parent=1 // pred_check
      _
    $region15: #{tpu_custom_call.1} parent=1 // pred_check_branch
      %24 = sbr.rel (0) target = $region17
    $region16: #{tpu_custom_call.1} parent=1 // pred_region
      _
    $region17: #{tpu_custom_call.1} parent=1 // pred_fallthru
      _
    // Predicated region
    $region18: #{tpu_custom_call.1} parent=1 // pred_check
      _
    $region19: #{tpu_custom_call.1} parent=1 // pred_check_branch
      %26 = sbr.rel (0) target = $region21
    $region20: #{tpu_custom_call.1} parent=1 // pred_region
      _
    $region21: #{tpu_custom_call.1} parent=1 // pred_fallthru
      _
    // Predicated region
    $region22: #{tpu_custom_call.1} parent=1 // pred_check
      _
    $region23: #{tpu_custom_call.1} parent=1 // pred_check_branch
      %28 = sbr.rel (0) target = $region25
    $region24: #{tpu_custom_call.1} parent=1 // pred_region
      _
    $region25: #{tpu_custom_call.1} parent=1 // pred_fallthru
      _
    // Predicated region
    $region26: #{tpu_custom_call.1} parent=1 // pred_check
      _
    $region27: #{tpu_custom_call.1} parent=1 // pred_check_branch
      %30 = sbr.rel (0) target = $region29
    $region28: #{tpu_custom_call.1} parent=1 // pred_region
      _
    $region29: #{tpu_custom_call.1} parent=1 // pred_fallthru
      _
    // Predicated region
    $region30: #{tpu_custom_call.1} parent=1 // pred_check
      _
    $region31: #{tpu_custom_call.1} parent=1 // pred_check_branch
      %32 = sbr.rel (0) target = $region33
    $region32: #{tpu_custom_call.1} parent=1 // pred_region
      _
    $region33: #{tpu_custom_call.1} parent=1 // pred_fallthru
      _
    // Predicated region
    $region34: #{tpu_custom_call.1} parent=1 // pred_check
      _
    $region35: #{tpu_custom_call.1} parent=1 // pred_check_branch
      %34 = sbr.rel (0) target = $region37
    $region36: #{tpu_custom_call.1} parent=1 // pred_region
      _
    $region37: #{tpu_custom_call.1} parent=1 // pred_fallthru
      _
    %v36 = vld [vmem:[%s2] sm:$0xf]
    %v37 = vld [vmem:[%s2 + $0x4] sm:$0x1]
    %v38 = vld [vmem:[%s0] sm:$0xff]
    %vm39 = vcmp.gt.s32.totalorder %v38, 0
    %v40 = vsel %vm39, %v38, 0
    %vm41 = vcmp.lt.s32.totalorder %v40, 9
    %v42 = vsel %vm41, %v40, 9
    %v43 = vlaneseq
    %v44 = vand.u32 %v43, 127
    %45 = vset.pattern.permute.xlu0 0
    %46 = vperm.xlu0 %45, %v42
    %v47 = vpop.permute.xlu0 %46
    %vm48 = vcmp.eq.s32.totalorder %v47, %v44
    %v49 = vsel %vm48, 1, 0
    %v50 = vcvt.s32.f32 %v49
    %v51 = vpack.c.bf16 %v50, %v50
    %v52 = vld [vmem:[%s1] sm:$0xff]
    %v53 = vld [vmem:[%s3] sm:$0x1]
    %55 = vset.pattern.permute.xlu0 0
    %56 = vperm.xlu0 %55, %v52
    %v57 = vpop.permute.xlu0 %56
    %v60 = vlaneseq
    %v61 = vshrl.u32 %v60, 7
    %v62 = vsub.s32 0, %v61
    %v63 = vrot.slane %v53, %v62
    %v65 = vmul.f32 %v57, %v63
    %v68 = vunpack.c.l.b16 %v36
    %v69 = vunpack.c.l.b16 %v37
    %v70 = vpack.c.b16 %v69, %v68
    %vm71 = vcmask 80896
    %v73 = vsel %vm71, %v51, 0
    %vm75 = vcmask 1044480
    %v77 = vsel %vm75, %v70, 0
    %79 = vmatprep.subr.bf16.mxu0 0
    %80 = vmatpush1.bf16.msra.mxu0 0
    %81 = vmatprep.subr.bf16.mxu0 0
    %82 = vmatpush1.bf16.msra.mxu0 0
    %83 = vmatprep.subr.bf16.mxu0 0
    %84 = vmatpush1.bf16.msra.mxu0 0
    %85 = vmatprep.subr.bf16.mxu0 0
    %86 = vmatpush1.bf16.msra.mxu0 0
    %87 = vmatprep.subr.bf16.mxu0 0
    %88 = vmatpush1.bf16.msra.mxu0 0
    %89 = vmatprep.subr.bf16.mxu0 0
    %90 = vmatpush1.bf16.msra.mxu0 0
    %91 = vmatprep.subr.bf16.mxu0 0
    %92 = vmatpush1.bf16.msra.mxu0 0
    %93 = vmatprep.subr.bf16.mxu0 0
    %94 = vmatpush1.bf16.msra.mxu0 %v77
    %95 = vmatprep.subr.bf16.mxu0 0
    %96 = vmatpush2.bf16.msra.mxu0 0
    %97 = vmatprep.subr.bf16.mxu0 0
    %98 = vmatpush2.bf16.msra.mxu0 0
    %99 = vmatprep.subr.bf16.mxu0 0
    %100 = vmatpush2.bf16.msra.mxu0 0
    %101 = vmatprep.subr.bf16.mxu0 0
    %102 = vmatpush2.bf16.msra.mxu0 0
    %103 = vmatprep.subr.bf16.mxu0 0
    %104 = vmatpush2.bf16.msra.mxu0 0
    %105 = vmatprep.subr.bf16.mxu0 0
    %106 = vmatpush2.bf16.msra.mxu0 0
    %107 = vmatprep.subr.bf16.mxu0 0
    %108 = vmatpush2.bf16.msra.mxu0 0
    %109 = vmatprep.subr.bf16.mxu0 0
    %110 = vmatpush2.bf16.msra.mxu0 0
    %111 = vmatprep.mubr.bf16.mxu0 0
    %112 = vmatmul.mubr.bf16.gmra.mxu0 %v73
    %v113 = vpop.f32.mrf.mxu0
    %v114 = vadd.f32 %v65, %v113
    %v115 = vpop.f32.mrf.mxu0
    %v116 = vpop.f32.mrf.mxu0
    %v117 = vpop.f32.mrf.mxu0
    %118 = vdwg.mxu0
    %v119 = vld [vmem:[%s4] sm:$0x1]
    %v121 = vlaneseq
    %v122 = vshrl.u32 %v121, 7
    %v123 = vsub.s32 0, %v122
    %v124 = vrot.slane %v119, %v123
    %v126 = vadd.f32 %v114, %v124
    %v127 = vmax.f32 %v126, 0.0
    %v128 = vpack.c.bf16 %v127, %v127
    %v129 = vld [vmem:[%s5] sm:$0xf]
    %v130 = vld [vmem:[%s5 + $0x4] sm:$0xf]
    %v131 = vld [vmem:[%s5 + $0x8] sm:$0xf]
    %v132 = vld [vmem:[%s5 + $0xc] sm:$0xf]
    %v133 = vld [vmem:[%s5 + $0x10] sm:$0xf]
    %v134 = vld [vmem:[%s5 + $0x14] sm:$0xf]
    %v135 = vld [vmem:[%s5 + $0x18] sm:$0xf]
    %v136 = vld [vmem:[%s5 + $0x1c] sm:$0xf]
    %v137 = vld [vmem:[%s6] sm:$0x1]
    %v139 = vlaneseq
    %v140 = vshrl.u32 %v139, 7
    %v141 = vsub.s32 0, %v140
    %v142 = vrot.slane %v137, %v141
    %v152 = vunpack.c.l.b16 %v129
    %v153 = vunpack.c.l.b16 %v130
    %v154 = vunpack.c.l.b16 %v131
    %v155 = vunpack.c.l.b16 %v132
    %v156 = vunpack.c.l.b16 %v133
    %v157 = vunpack.c.l.b16 %v134
    %v158 = vunpack.c.l.b16 %v135
    %v159 = vunpack.c.l.b16 %v136
    %v160 = vpack.c.b16 %v153, %v152
    %v161 = vpack.c.b16 %v155, %v154
    %v162 = vpack.c.b16 %v157, %v156
    %v163 = vpack.c.b16 %v159, %v158
    %vm168 = vcmask 523264
    %v170 = vsel %vm168, %v128, 0
    %172 = vmatprep.subr.bf16.mxu0 0
    %173 = vmatpush1.bf16.msra.mxu0 0
    %174 = vmatprep.subr.bf16.mxu0 0
    %175 = vmatpush1.bf16.msra.mxu0 0
    %176 = vmatprep.subr.bf16.mxu0 0
    %177 = vmatpush1.bf16.msra.mxu0 0
    %178 = vmatprep.subr.bf16.mxu0 0
    %179 = vmatpush1.bf16.msra.mxu0 0
    %180 = vmatprep.subr.bf16.mxu0 0
    %181 = vmatpush1.bf16.msra.mxu0 %v163
    %182 = vmatprep.subr.bf16.mxu0 0
    %183 = vmatpush1.bf16.msra.mxu0 %v162
    %184 = vmatprep.subr.bf16.mxu0 0
    %185 = vmatpush1.bf16.msra.mxu0 %v161
    %186 = vmatprep.subr.bf16.mxu0 0
    %187 = vmatpush1.bf16.msra.mxu0 %v160
    %188 = vmatprep.subr.bf16.mxu0 0
    %189 = vmatpush2.bf16.msra.mxu0 0
    %190 = vmatprep.subr.bf16.mxu0 0
    %191 = vmatpush2.bf16.msra.mxu0 0
    %192 = vmatprep.subr.bf16.mxu0 0
    %193 = vmatpush2.bf16.msra.mxu0 0
    %194 = vmatprep.subr.bf16.mxu0 0
    %195 = vmatpush2.bf16.msra.mxu0 0
    %196 = vmatprep.subr.bf16.mxu0 0
    %197 = vmatpush2.bf16.msra.mxu0 0
    %198 = vmatprep.subr.bf16.mxu0 0
    %199 = vmatpush2.bf16.msra.mxu0 0
    %200 = vmatprep.subr.bf16.mxu0 0
    %201 = vmatpush2.bf16.msra.mxu0 0
    %202 = vmatprep.subr.bf16.mxu0 0
    %203 = vmatpush2.bf16.msra.mxu0 0
    %204 = vmatprep.mubr.bf16.mxu0 0
    %205 = vmatmul.mubr.bf16.gmra.mxu0 %v170
    %v206 = vpop.f32.mrf.mxu0
    %v207 = vadd.f32 %v142, %v206
    %v208 = vpop.f32.mrf.mxu0
    %v209 = vpop.f32.mrf.mxu0
    %v210 = vpop.f32.mrf.mxu0
    %211 = vdwg.mxu0
    %v212 = vmax.f32 %v207, 0.0
    %v213 = vld [vmem:[%s7] sm:$0x1]
    %v214 = vld [vmem:[#allocation2] sm:$0x1]
    %216 = vset.pattern.permute.xlu0 0
    %217 = vperm.xlu0 %216, %v214
    %v218 = vpop.permute.xlu0 %217
    %v220 = vlaneseq
    %v221 = vshrl.u32 %v220, 7
    %v222 = vsub.s32 0, %v221
    %v223 = vrot.slane %v218, %v222
    %vm224 = vcmask 261120
    %v226 = vsel %vm224, %v213, 0
    %v229 = vsel %vm224, %v212, 0
    %231 = vmatprep.subr.mxu0 0.0
    %232 = vmatpush1.xpose.msra.mxu0 0.0
    %233 = vmatprep.subr.mxu0 0.0
    %234 = vmatpush1.xpose.msra.mxu0 0.0
    %235 = vmatprep.subr.mxu0 0.0
    %236 = vmatpush1.xpose.msra.mxu0 0.0
    %237 = vmatprep.subr.mxu0 0.0
    %238 = vmatpush1.xpose.msra.mxu0 0.0
    %239 = vmatprep.subr.mxu0 0.0
    %240 = vmatpush1.xpose.msra.mxu0 0.0
    %241 = vmatprep.subr.mxu0 0.0
    %242 = vmatpush1.xpose.msra.mxu0 0.0
    %243 = vmatprep.subr.mxu0 0.0
    %244 = vmatpush1.xpose.msra.mxu0 0.0
    %245 = vmatprep.subr.mxu0 0.0
    %246 = vmatpush1.xpose.msra.mxu0 0.0
    %247 = vmatprep.subr.mxu0 0.0
    %248 = vmatpush1.xpose.msra.mxu0 0.0
    %249 = vmatprep.subr.mxu0 0.0
    %250 = vmatpush1.xpose.msra.mxu0 0.0
    %251 = vmatprep.subr.mxu0 0.0
    %252 = vmatpush1.xpose.msra.mxu0 0.0
    %253 = vmatprep.subr.mxu0 0.0
    %254 = vmatpush1.xpose.msra.mxu0 0.0
    %255 = vmatprep.subr.mxu0 0.0
    %256 = vmatpush1.xpose.msra.mxu0 0.0
    %257 = vmatprep.subr.mxu0 0.0
    %258 = vmatpush1.xpose.msra.mxu0 0.0
    %259 = vmatprep.subr.mxu0 0.0
    %260 = vmatpush1.xpose.msra.mxu0 0.0
    %261 = vmatprep.subr.mxu0 0.0
    %262 = vmatpush1.xpose.msra.mxu0 %v229
    %263 = vmatprep.subr.mxu0 0.0
    %264 = vmatpush2.xpose.msra.mxu0 0.0
    %265 = vmatprep.subr.mxu0 0.0
    %266 = vmatpush2.xpose.msra.mxu0 0.0
    %267 = vmatprep.subr.mxu0 0.0
    %268 = vmatpush2.xpose.msra.mxu0 0.0
    %269 = vmatprep.subr.mxu0 0.0
    %270 = vmatpush2.xpose.msra.mxu0 0.0
    %271 = vmatprep.subr.mxu0 0.0
    %272 = vmatpush2.xpose.msra.mxu0 0.0
    %273 = vmatprep.subr.mxu0 0.0
    %274 = vmatpush2.xpose.msra.mxu0 0.0
    %275 = vmatprep.subr.mxu0 0.0
    %276 = vmatpush2.xpose.msra.mxu0 0.0
    %277 = vmatprep.subr.mxu0 0.0
    %278 = vmatpush2.xpose.msra.mxu0 0.0
    %279 = vmatprep.subr.mxu0 0.0
    %280 = vmatpush2.xpose.msra.mxu0 0.0
    %281 = vmatprep.subr.mxu0 0.0
    %282 = vmatpush2.xpose.msra.mxu0 0.0
    %283 = vmatprep.subr.mxu0 0.0
    %284 = vmatpush2.xpose.msra.mxu0 0.0
    %285 = vmatprep.subr.mxu0 0.0
    %286 = vmatpush2.xpose.msra.mxu0 0.0
    %287 = vmatprep.subr.mxu0 0.0
    %288 = vmatpush2.xpose.msra.mxu0 0.0
    %289 = vmatprep.subr.mxu0 0.0
    %290 = vmatpush2.xpose.msra.mxu0 0.0
    %291 = vmatprep.subr.mxu0 0.0
    %292 = vmatpush2.xpose.msra.mxu0 0.0
    %293 = vmatprep.subr.mxu0 0.0
    %294 = vmatpush2.xpose.msra.mxu0 0.0
    %295 = vmatprep.mubr.f32.mxu0 0.0
    %296 = vmatmul.mubr.f32.gmra.mxu0 %v226
    %v297 = vpop.f32.mrf.mxu0
    %v298 = vadd.f32 %v223, %v297
    %v299 = vpop.f32.mrf.mxu0
    %300 = vdwg.mxu0
    %v301 = vxor.u32 %v298, 2147483648
    %v302 = vmul.f32 %v301, 1.442695
    %v303 = vpow.pop %v302
    %v304 = vadd.f32 %v303, 1.0
    %v305 = vrcp.pop %v304
    %v306 = vmul.f32 1.0, %v305
    %vm307 = vcmask 57344
    %308 = vst.msk [vmem:[#allocation3] sm:$0x1] %vm307, %v306
    // Predicated region
    $region38: #{tpu_custom_call.1} parent=1 // pred_check
      _
    $region39: #{tpu_custom_call.1} parent=1 // pred_check_branch
      %310 = sbr.rel (0) target = $region41
    $region40: #{tpu_custom_call.1} parent=1 // pred_region
      %s312 = ssub.s32 16, 16
      %313 = vsyncadd [#allocation4], %s312
      %s315 = sshll.u32 [#allocation3], 4
      %s316 = int_to_ptr.vmem [resolvable:$true] %s315
      %318 = dma.vmem_to_hbm [thread:$0]  %s316, 16, %s9, [#allocation4]
    $region41: #{tpu_custom_call.1} parent=1 // pred_fallthru
      _
    // Predicated region
    $region42: #{tpu_custom_call.1} parent=1 // pred_check
      _
    $region43: #{tpu_custom_call.1} parent=1 // pred_check_branch
      %320 = sbr.rel (0) target = $region45
    $region44: #{tpu_custom_call.1} parent=1 // pred_region
      %321 = dma.done [#allocation4], 16
    $region45: #{tpu_custom_call.1} parent=1 // pred_fallthru
      _
    %322 = vsyncpa [#allocation4], 1

</llo_original>
